<compile_context>
chip_gen: v7x
topology: tpu7x:2x2x1
jax: 0.10.0
libtpu: 0.0.40
codegen_flags: <defaults>
</compile_context>

<pallas_src>
import functools

import jax
import jax.numpy as jnp
from jax.experimental import pallas as pl
from jax.experimental.pallas import tpu as pltpu


def _round_up(x, m):
    return ((x + m - 1) // m) * m


def generic_block_kernel(
    x_ref,        # [TB, IN]  f32   input rows (no lane padding)
    w_in_ref,     # [IN, H]   bf16  first trunk layer weight
    w_hid_ref,    # [3, H, H] bf16  stacked hidden trunk weights (w1, w2, w3)
    b_trunk_ref,  # [4, H]    f32   stacked trunk biases (b0..b3)
    w_head_ref,   # [H, FP]   bf16  fused heads [-(w1a@w1b) | w2a@w2b | 0]
    b_head_ref,   # [1, FP]   f32   fused head bias
    out_ref,      # [TB, FP]  f32   [x - backcast | forecast | 0]
):
    x = x_ref[...]
    b_trunk = b_trunk_ref[...]

    # MLP trunk: Linear -> ReLU, 4 layers (norm=None, dropout identity in eval).
    # TODO(synk): training-mode nn.Dropout(p=0.2) is intentionally not reproduced.
    h = jnp.dot(x.astype(jnp.bfloat16), w_in_ref[...],
                preferred_element_type=jnp.float32)
    h = jnp.maximum(h + b_trunk[0:1, :], 0.0)
    for i in range(3):
        h = jnp.dot(h.astype(jnp.bfloat16), w_hid_ref[i],
                    preferred_element_type=jnp.float32)
        h = jnp.maximum(h + b_trunk[i + 1:i + 2, :], 0.0)

    # Fused output heads: one [TB,H] x [H,FP] matmul (heads composed offline,
    # which is exact since there is no nonlinearity between the head layers).
    heads = jnp.dot(h.astype(jnp.bfloat16), w_head_ref[...],
                    preferred_element_type=jnp.float32) + b_head_ref[...]

    # heads columns are [-backcast | forecast | 0]. Write the full lane-dense
    # slab, then add the residual x into the first in_size lanes (masked store).
    out_ref[...] = heads.astype(out_ref.dtype)
    in_size = x.shape[1]
    out_ref[:, :in_size] = (x + heads[:, :in_size]).astype(out_ref.dtype)


def _pack_params(params, in_size, hidden_size, theta, output_size, fp):
    f32, bf16 = jnp.float32, jnp.bfloat16
    del theta  # folded away by the head fusion

    w_in = params["w0"].astype(bf16)                                  # [IN, H]
    w_hid = jnp.stack([params["w1"], params["w2"], params["w3"]],
                      axis=0).astype(bf16)                            # [3, H, H]
    b_trunk = jnp.concatenate(
        [params["b0"], params["b1"], params["b2"], params["b3"]], axis=0
    ).astype(f32)                                                     # [4, H]

    # Compose each head's two Linear layers; pre-multiply in f32, cast once to
    # bf16. Backcast half is negated so the kernel's residual is a single add.
    w_bc = params["w1a"] @ params["w1b"]                              # [H, IN]
    b_bc = params["b1a"] @ params["w1b"] + params["b1b"]              # [1, IN]
    w_fc = params["w2a"] @ params["w2b"]                              # [H, OUT]
    b_fc = params["b2a"] @ params["w2b"] + params["b2b"]              # [1, OUT]

    w_head = jnp.zeros((hidden_size, fp), f32)
    w_head = w_head.at[:, :in_size].set(-w_bc)
    w_head = w_head.at[:, in_size:in_size + output_size].set(w_fc)
    w_head = w_head.astype(bf16)

    b_head = jnp.zeros((1, fp), f32)
    b_head = b_head.at[:, :in_size].set(-b_bc)
    b_head = b_head.at[:, in_size:in_size + output_size].set(b_fc)

    return (w_in, w_hid, b_trunk, w_head, b_head)


@functools.partial(jax.jit, static_argnames=("block_rows",))
def generic_block(x, params, block_rows=2048):
    """Full GenericBlock forward as one pipelined Pallas call."""
    x = jnp.asarray(x, jnp.float32)
    B, in_size = x.shape
    hidden_size = params["w0"].shape[1]
    theta = params["w1a"].shape[1]
    output_size = params["w2b"].shape[1]

    # Lane-dense fused output width.
    fp = _round_up(in_size + output_size, 128)

    # Balanced batch tiling: near-equal tiles (multiple of 8 sublanes) instead
    # of padding all the way up to block_rows.
    n_tiles = max(1, pl.cdiv(B, block_rows))
    tb = _round_up(pl.cdiv(B, n_tiles), 8)
    n_tiles = pl.cdiv(B, tb)
    b_pad = n_tiles * tb

    x_pad = jnp.pad(x, ((0, b_pad - B), (0, 0)))
    packed = _pack_params(params, in_size, hidden_size, theta, output_size, fp)

    grid = (n_tiles,)
    x_spec = pl.BlockSpec((tb, in_size), lambda i: (i, 0))
    out_spec = pl.BlockSpec((tb, fp), lambda i: (i, 0))

    def resident(arr):
        # Whole-array block, same index every grid step; single-buffered since
        # double-buffering a grid-invariant operand wastes VMEM + prologue DMAs.
        nd = arr.ndim
        return pl.BlockSpec(arr.shape, lambda i: (0,) * nd,
                            pipeline_mode=pl.Buffered(1))

    flops = 2 * b_pad * (in_size * hidden_size
                         + 3 * hidden_size * hidden_size
                         + hidden_size * fp)
    bytes_accessed = int(x_pad.size * 4 + b_pad * fp * 4
                         + sum(int(a.size) * a.dtype.itemsize for a in packed))

    fused = pl.pallas_call(
        generic_block_kernel,
        out_shape=jax.ShapeDtypeStruct((b_pad, fp), jnp.float32),
        grid=grid,
        in_specs=[x_spec] + [resident(a) for a in packed],
        out_specs=out_spec,
        compiler_params=pltpu.CompilerParams(
            # TODO(synk): on v7x, pltpu.CORE_PARALLEL here would shard the batch
            # grid over both TensorCores; kept "parallel" for portability.
            dimension_semantics=("parallel",),
            vmem_limit_bytes=32 * 1024 * 1024,
        ),
        cost_estimate=pl.CostEstimate(
            flops=flops, transcendentals=0, bytes_accessed=bytes_accessed),
    )(x_pad, *packed)

    # NOTE: if the consumer can take the fused slab, return it directly and
    # slice at the point of use to avoid materializing these two copies.
    backcast_res = fused[:B, :in_size]
    forecast = fused[:B, in_size:in_size + output_size]
    return backcast_res, forecast


def _linear_params(key, fan_in, fan_out):
    """PyTorch-style init U(-1/sqrt(fan_in), 1/sqrt(fan_in)); weight as [in, out]."""
    kw, kb = jax.random.split(key)
    bound = 1.0 / (fan_in ** 0.5)
    w = jax.random.uniform(kw, (fan_in, fan_out), jnp.float32, -bound, bound)
    b = jax.random.uniform(kb, (1, fan_out), jnp.float32, -bound, bound)
    return w, b


def make_params(key, in_size, hidden_size, theta, output_size):
    keys = jax.random.split(key, 8)
    params = {}
    params["w0"], params["b0"] = _linear_params(keys[0], in_size, hidden_size)
    params["w1"], params["b1"] = _linear_params(keys[1], hidden_size, hidden_size)
    params["w2"], params["b2"] = _linear_params(keys[2], hidden_size, hidden_size)
    params["w3"], params["b3"] = _linear_params(keys[3], hidden_size, hidden_size)
    params["w1a"], params["b1a"] = _linear_params(keys[4], hidden_size, theta)
    params["w1b"], params["b1b"] = _linear_params(keys[5], theta, in_size)
    params["w2a"], params["b2a"] = _linear_params(keys[6], hidden_size, theta)
    params["w2b"], params["b2b"] = _linear_params(keys[7], theta, output_size)
    return params


def reference_forward(x, params):
    """Plain-JAX reference matching the kernel math (bf16 operands, f32 accum,
    head layers composed in f32 — exact in real arithmetic)."""
    bf16 = jnp.bfloat16

    def mm(a, w):
        return jnp.dot(a.astype(bf16), w.astype(bf16),
                       preferred_element_type=jnp.float32)

    x = jnp.asarray(x, jnp.float32)
    h = x
    for i in range(4):
        h = jnp.maximum(mm(h, params[f"w{i}"]) + params[f"b{i}"], 0.0)

    w_bc = params["w1a"] @ params["w1b"]
    b_bc = params["b1a"] @ params["w1b"] + params["b1b"]
    w_fc = params["w2a"] @ params["w2b"]
    b_fc = params["b2a"] @ params["w2b"] + params["b2b"]

    backcast = mm(h, w_bc) + b_bc
    forecast = mm(h, w_fc) + b_fc
    return x - backcast, forecast


if __name__ == "__main__":
    key = jax.random.PRNGKey(0)

    # Config 1: GenericBlock(input_size=(16,), hidden=32, theta=8, layers=4,
    # output_size=1) applied to x of shape [8, 16].
    batch, in_size, hidden, theta, out_size = 8, 16, 32, 8, 1
    kx, kp, key = jax.random.split(key, 3)
    x = jax.random.normal(kx, (batch, in_size), jnp.float32)
    params = make_params(kp, in_size, hidden, theta, out_size)

    backcast_res, forecast = generic_block(x, params)
    jax.block_until_ready((backcast_res, forecast))

    ref_b, ref_f = reference_forward(x, params)
    assert backcast_res.shape == (batch, in_size)
    assert forecast.shape == (batch, out_size)
    assert jnp.allclose(backcast_res, ref_b, atol=2e-3, rtol=2e-3)
    assert jnp.allclose(forecast, ref_f, atol=2e-3, rtol=2e-3)

    # Config 2: larger batch exercising balanced tiling (3 x 200-row tiles).
    batch2, in2, hidden2, theta2, out2 = 600, 24, 64, 8, 1
    kx2, kp2 = jax.random.split(key)
    x2 = jax.random.normal(kx2, (batch2, in2), jnp.float32)
    params2 = make_params(kp2, in2, hidden2, theta2, out2)

    b2, f2 = generic_block(x2, params2, block_rows=256)
    jax.block_until_ready((b2, f2))
    rb2, rf2 = reference_forward(x2, params2)
    assert b2.shape == (batch2, in2)
    assert f2.shape == (batch2, out2)
    assert jnp.allclose(b2, rb2, atol=2e-3, rtol=2e-3)
    assert jnp.allclose(f2, rf2, atol=2e-3, rtol=2e-3)

    print("KERNEL_OK")
</pallas_src>

<mosaic_0001>
module attributes {stable_mosaic.version = 11 : i64} {
  func.func @generic_block_kernel(%arg0: i32, %arg1: memref<8x16xf32, #tpu.memory_space<vmem>>, %arg2: memref<16x32xbf16, #tpu.memory_space<vmem>>, %arg3: memref<3x32x32xbf16, #tpu.memory_space<vmem>>, %arg4: memref<4x32xf32, #tpu.memory_space<vmem>>, %arg5: memref<32x128xbf16, #tpu.memory_space<vmem>>, %arg6: memref<1x128xf32, #tpu.memory_space<vmem>>, %arg7: memref<8x128xf32, #tpu.memory_space<vmem>>) attributes {dimension_semantics = [#tpu.dimension_semantics<parallel>], iteration_bounds = array<i64: 1>, scalar_prefetch = 0 : i64, scratch_operands = 0 : i64, tpu.core_type = #tpu.core_type<tc>, window_params = [{transform_indices = @transform_0, window_bounds = array<i64: 8, 16>}, {pipeline_mode = #tpu.pipeline_mode<synchronous>, transform_indices = @transform_1, window_bounds = array<i64: 16, 32>}, {pipeline_mode = #tpu.pipeline_mode<synchronous>, transform_indices = @transform_2, window_bounds = array<i64: 3, 32, 32>}, {pipeline_mode = #tpu.pipeline_mode<synchronous>, transform_indices = @transform_3, window_bounds = array<i64: 4, 32>}, {pipeline_mode = #tpu.pipeline_mode<synchronous>, transform_indices = @transform_4, window_bounds = array<i64: 32, 128>}, {pipeline_mode = #tpu.pipeline_mode<synchronous>, transform_indices = @transform_5, window_bounds = array<i64: 1, 128>}, {transform_indices = @transform_6, window_bounds = array<i64: 8, 128>}]} {
    %c0 = arith.constant 0 : index
    %c0_0 = arith.constant 0 : index
    %0 = vector.load %arg1[%c0, %c0_0] : memref<8x16xf32, #tpu.memory_space<vmem>>, vector<8x16xf32>
    %c0_1 = arith.constant 0 : index
    %c0_2 = arith.constant 0 : index
    %1 = vector.load %arg4[%c0_1, %c0_2] : memref<4x32xf32, #tpu.memory_space<vmem>>, vector<4x32xf32>
    %2 = arith.truncf %0 : vector<8x16xf32> to vector<8x16xbf16>
    %c0_3 = arith.constant 0 : index
    %c0_4 = arith.constant 0 : index
    %3 = vector.load %arg2[%c0_3, %c0_4] : memref<16x32xbf16, #tpu.memory_space<vmem>>, vector<16x32xbf16>
    %cst = arith.constant dense<0.000000e+00> : vector<8x32xf32>
    %4 = tpu.matmul %2, %3, %cst {dimension_numbers = #tpu.dot_dimension_numbers<[1], [0], [0], [1], [0, 0, 1, 1], [], []>} : vector<8x16xbf16>, vector<16x32xbf16>, vector<8x32xf32> -> vector<8x32xf32>
    %5 = vector.extract_strided_slice %1 {offsets = [0, 0], sizes = [1, 32], strides = [1, 1]} : vector<4x32xf32> to vector<1x32xf32>
    %6 = vector.broadcast %5 : vector<1x32xf32> to vector<8x32xf32>
    %7 = arith.addf %4, %6 : vector<8x32xf32>
    %cst_5 = arith.constant 0.000000e+00 : f32
    %8 = vector.broadcast %cst_5 : f32 to vector<8x32xf32>
    %9 = arith.maximumf %7, %8 : vector<8x32xf32>
    %10 = arith.truncf %9 : vector<8x32xf32> to vector<8x32xbf16>
    %c0_6 = arith.constant 0 : index
    %c0_7 = arith.constant 0 : index
    %c0_8 = arith.constant 0 : index
    %11 = vector.load %arg3[%c0_6, %c0_7, %c0_8] : memref<3x32x32xbf16, #tpu.memory_space<vmem>>, vector<1x32x32xbf16>
    %12 = vector.shape_cast %11 : vector<1x32x32xbf16> to vector<32x32xbf16>
    %cst_9 = arith.constant dense<0.000000e+00> : vector<8x32xf32>
    %13 = tpu.matmul %10, %12, %cst_9 {dimension_numbers = #tpu.dot_dimension_numbers<[1], [0], [0], [1], [0, 0, 1, 1], [], []>} : vector<8x32xbf16>, vector<32x32xbf16>, vector<8x32xf32> -> vector<8x32xf32>
    %14 = vector.extract_strided_slice %1 {offsets = [1, 0], sizes = [1, 32], strides = [1, 1]} : vector<4x32xf32> to vector<1x32xf32>
    %15 = vector.broadcast %14 : vector<1x32xf32> to vector<8x32xf32>
    %16 = arith.addf %13, %15 : vector<8x32xf32>
    %cst_10 = arith.constant 0.000000e+00 : f32
    %17 = vector.broadcast %cst_10 : f32 to vector<8x32xf32>
    %18 = arith.maximumf %16, %17 : vector<8x32xf32>
    %19 = arith.truncf %18 : vector<8x32xf32> to vector<8x32xbf16>
    %c1 = arith.constant 1 : index
    %c0_11 = arith.constant 0 : index
    %c0_12 = arith.constant 0 : index
    %20 = vector.load %arg3[%c1, %c0_11, %c0_12] : memref<3x32x32xbf16, #tpu.memory_space<vmem>>, vector<1x32x32xbf16>
    %21 = vector.shape_cast %20 : vector<1x32x32xbf16> to vector<32x32xbf16>
    %cst_13 = arith.constant dense<0.000000e+00> : vector<8x32xf32>
    %22 = tpu.matmul %19, %21, %cst_13 {dimension_numbers = #tpu.dot_dimension_numbers<[1], [0], [0], [1], [0, 0, 1, 1], [], []>} : vector<8x32xbf16>, vector<32x32xbf16>, vector<8x32xf32> -> vector<8x32xf32>
    %23 = vector.extract_strided_slice %1 {offsets = [2, 0], sizes = [1, 32], strides = [1, 1]} : vector<4x32xf32> to vector<1x32xf32>
    %24 = vector.broadcast %23 : vector<1x32xf32> to vector<8x32xf32>
    %25 = arith.addf %22, %24 : vector<8x32xf32>
    %cst_14 = arith.constant 0.000000e+00 : f32
    %26 = vector.broadcast %cst_14 : f32 to vector<8x32xf32>
    %27 = arith.maximumf %25, %26 : vector<8x32xf32>
    %28 = arith.truncf %27 : vector<8x32xf32> to vector<8x32xbf16>
    %c2 = arith.constant 2 : index
    %c0_15 = arith.constant 0 : index
    %c0_16 = arith.constant 0 : index
    %29 = vector.load %arg3[%c2, %c0_15, %c0_16] : memref<3x32x32xbf16, #tpu.memory_space<vmem>>, vector<1x32x32xbf16>
    %30 = vector.shape_cast %29 : vector<1x32x32xbf16> to vector<32x32xbf16>
    %cst_17 = arith.constant dense<0.000000e+00> : vector<8x32xf32>
    %31 = tpu.matmul %28, %30, %cst_17 {dimension_numbers = #tpu.dot_dimension_numbers<[1], [0], [0], [1], [0, 0, 1, 1], [], []>} : vector<8x32xbf16>, vector<32x32xbf16>, vector<8x32xf32> -> vector<8x32xf32>
    %32 = vector.extract_strided_slice %1 {offsets = [3, 0], sizes = [1, 32], strides = [1, 1]} : vector<4x32xf32> to vector<1x32xf32>
    %33 = vector.broadcast %32 : vector<1x32xf32> to vector<8x32xf32>
    %34 = arith.addf %31, %33 : vector<8x32xf32>
    %cst_18 = arith.constant 0.000000e+00 : f32
    %35 = vector.broadcast %cst_18 : f32 to vector<8x32xf32>
    %36 = arith.maximumf %34, %35 : vector<8x32xf32>
    %37 = arith.truncf %36 : vector<8x32xf32> to vector<8x32xbf16>
    %c0_19 = arith.constant 0 : index
    %c0_20 = arith.constant 0 : index
    %38 = vector.load %arg5[%c0_19, %c0_20] : memref<32x128xbf16, #tpu.memory_space<vmem>>, vector<32x128xbf16>
    %cst_21 = arith.constant dense<0.000000e+00> : vector<8x128xf32>
    %39 = tpu.matmul %37, %38, %cst_21 {dimension_numbers = #tpu.dot_dimension_numbers<[1], [0], [0], [1], [0, 0, 1, 1], [], []>} : vector<8x32xbf16>, vector<32x128xbf16>, vector<8x128xf32> -> vector<8x128xf32>
    %c0_22 = arith.constant 0 : index
    %c0_23 = arith.constant 0 : index
    %40 = vector.load %arg6[%c0_22, %c0_23] : memref<1x128xf32, #tpu.memory_space<vmem>>, vector<1x128xf32>
    %41 = vector.broadcast %40 : vector<1x128xf32> to vector<8x128xf32>
    %42 = arith.addf %39, %41 : vector<8x128xf32>
    %c0_24 = arith.constant 0 : index
    %c0_25 = arith.constant 0 : index
    %43 = vector.load %arg7[%c0_24, %c0_25] : memref<8x128xf32, #tpu.memory_space<vmem>>, vector<8x128xf32>
    tpu.vector_store %arg7[%c0_24, %c0_25], %42 {strides = array<i32>} : memref<8x128xf32, #tpu.memory_space<vmem>>, vector<8x128xf32>,
    %44 = vector.extract_strided_slice %42 {offsets = [0, 0], sizes = [8, 16], strides = [1, 1]} : vector<8x128xf32> to vector<8x16xf32>
    %45 = arith.addf %0, %44 : vector<8x16xf32>
    %c0_26 = arith.constant 0 : index
    %c0_27 = arith.constant 0 : index
    %46 = vector.load %arg7[%c0_26, %c0_27] : memref<8x128xf32, #tpu.memory_space<vmem>>, vector<8x16xf32>
    tpu.vector_store %arg7[%c0_26, %c0_27], %45 {strides = array<i32>} : memref<8x128xf32, #tpu.memory_space<vmem>>, vector<8x16xf32>,
    return
  }
  func.func @transform_0(%arg0: i32) -> (i32, i32) {
    %c0_i32 = arith.constant 0 : i32
    %c0_i32_0 = arith.constant 0 : i32
    return %arg0, %c0_i32 : i32, i32
  }
  func.func @transform_1(%arg0: i32) -> (i32, i32) {
    %c0_i32 = arith.constant 0 : i32
    %c0_i32_0 = arith.constant 0 : i32
    %c0_i32_1 = arith.constant 0 : i32
    return %c0_i32, %c0_i32_0 : i32, i32
  }
  func.func @transform_2(%arg0: i32) -> (i32, i32, i32) {
    %c0_i32 = arith.constant 0 : i32
    %c0_i32_0 = arith.constant 0 : i32
    %c0_i32_1 = arith.constant 0 : i32
    %c0_i32_2 = arith.constant 0 : i32
    return %c0_i32, %c0_i32_0, %c0_i32_1 : i32, i32, i32
  }
  func.func @transform_3(%arg0: i32) -> (i32, i32) {
    %c0_i32 = arith.constant 0 : i32
    %c0_i32_0 = arith.constant 0 : i32
    %c0_i32_1 = arith.constant 0 : i32
    return %c0_i32, %c0_i32_0 : i32, i32
  }
  func.func @transform_4(%arg0: i32) -> (i32, i32) {
    %c0_i32 = arith.constant 0 : i32
    %c0_i32_0 = arith.constant 0 : i32
    %c0_i32_1 = arith.constant 0 : i32
    return %c0_i32, %c0_i32_0 : i32, i32
  }
  func.func @transform_5(%arg0: i32) -> (i32, i32) {
    %c0_i32 = arith.constant 0 : i32
    %c0_i32_0 = arith.constant 0 : i32
    %c0_i32_1 = arith.constant 0 : i32
    return %c0_i32, %c0_i32_0 : i32, i32
  }
  func.func @transform_6(%arg0: i32) -> (i32, i32) {
    %c0_i32 = arith.constant 0 : i32
    %c0_i32_0 = arith.constant 0 : i32
    return %arg0, %c0_i32 : i32, i32
  }
}

</mosaic_0001>

<llo_original>
// kernel: generic_block.1
$region0: #{generic_block.1}
  #allocation0 [shape = 'u32[]', space=smem, size = 0x4, offset = 0x4, fixed_abs, tag = 'smem constant byte address 0x4 - core index']
  #allocation1 [shape = 'u32[144,128]{1,0:T(1,128)}', space=vmem, size = 0x12000, scoped, tag = 'internal scratch']
  %s0 = inlined_call_operand.vmem [shape: f32[8,16], index: 0, kind: input, shape index: {}]
  %s1 = inlined_call_operand.vmem [shape: bf16[16,32], index: 1, kind: input, shape index: {}]
  %s2 = inlined_call_operand.vmem [shape: bf16[3,32,32], index: 2, kind: input, shape index: {}]
  %s3 = inlined_call_operand.vmem [shape: f32[4,32], index: 3, kind: input, shape index: {}]
  %s4 = inlined_call_operand.vmem [shape: bf16[32,128], index: 4, kind: input, shape index: {}]
  %s5 = inlined_call_operand.vmem [shape: f32[1,128], index: 5, kind: input, shape index: {}]
  %s6 = inlined_call_operand.vmem [shape: f32[8,128], index: 6, kind: output, shape index: {}]
  %s7 = sld [smem:[#allocation0]]
  $region34: #{generic_block.1} parent=0
    _
  %s9 = ssub.s32 1, %s7
  %s10 = scalar_select 0, %s9, %s7
  // Predicated region
  $region2: #{generic_block.1} parent=0 // pred_check
    _
  $region3: #{generic_block.1} parent=0 // pred_check_branch
    %12 = sbr.rel (0) target = $region5
  $region4: #{generic_block.1} parent=0 // pred_region
    _
  $region5: #{generic_block.1} parent=0 // pred_fallthru
    _
  // Predicated region
  $region6: #{generic_block.1} parent=0 // pred_check
    _
  $region7: #{generic_block.1} parent=0 // pred_check_branch
    %14 = sbr.rel (0) target = $region9
  $region8: #{generic_block.1} parent=0 // pred_region
    _
  $region9: #{generic_block.1} parent=0 // pred_fallthru
    _
  // Predicated region
  $region10: #{generic_block.1} parent=0 // pred_check
    _
  $region11: #{generic_block.1} parent=0 // pred_check_branch
    %16 = sbr.rel (0) target = $region13
  $region12: #{generic_block.1} parent=0 // pred_region
    _
  $region13: #{generic_block.1} parent=0 // pred_fallthru
    _
  // Predicated region
  $region14: #{generic_block.1} parent=0 // pred_check
    _
  $region15: #{generic_block.1} parent=0 // pred_check_branch
    %18 = sbr.rel (0) target = $region17
  $region16: #{generic_block.1} parent=0 // pred_region
    _
  $region17: #{generic_block.1} parent=0 // pred_fallthru
    _
  // Predicated region
  $region18: #{generic_block.1} parent=0 // pred_check
    _
  $region19: #{generic_block.1} parent=0 // pred_check_branch
    %20 = sbr.rel (0) target = $region21
  $region20: #{generic_block.1} parent=0 // pred_region
    _
  $region21: #{generic_block.1} parent=0 // pred_fallthru
    _
  // Predicated region
  $region22: #{generic_block.1} parent=0 // pred_check
    _
  $region23: #{generic_block.1} parent=0 // pred_check_branch
    %22 = sbr.rel (0) target = $region25
  $region24: #{generic_block.1} parent=0 // pred_region
    _
  $region25: #{generic_block.1} parent=0 // pred_fallthru
    _
  %v24 = vld [vmem:[%s0] sm:$0xff]
  %v25 = vld [vmem:[%s3] sm:$0xf]
  %v26 = vpack.c.bf16 %v24, %v24
  %v27 = vld [vmem:[%s1] sm:$0xf]
  %v28 = vld [vmem:[%s1 + $0x4] sm:$0xf]
  %v29 = vlaneseq
  %v30 = vshrl.u32 %v29, 7
  %v31 = vsub.s32 0, %v30
  %v32 = vrot.slane %v25, %v31
  %v35 = vunpack.c.l.b16 %v27
  %v36 = vunpack.c.l.b16 %v28
  %v37 = vpack.c.b16 %v36, %v35
  %vm39 = vcmask 130048
  %v41 = vsel %vm39, %v26, 0
  %43 = vmatprep.subr.bf16.mxu0 0
  %44 = vmatpush1.bf16.msra.mxu0 %v37
  %45 = vmatprep.subr.bf16.mxu0 0
  %46 = vmatpush1.bf16.msra.mxu0 0
  %47 = vmatprep.subr.bf16.mxu0 0
  %48 = vmatpush1.bf16.msra.mxu0 0
  %49 = vmatprep.subr.bf16.mxu0 0
  %50 = vmatpush1.bf16.msra.mxu0 0
  %51 = vmatprep.subr.bf16.mxu0 0
  %52 = vmatpush1.bf16.msra.mxu0 0
  %53 = vmatprep.subr.bf16.mxu0 0
  %54 = vmatpush1.bf16.msra.mxu0 0
  %55 = vmatprep.subr.bf16.mxu0 0
  %56 = vmatpush1.bf16.msra.mxu0 0
  %57 = vmatprep.subr.bf16.mxu0 0
  %58 = vmatpush1.bf16.msra.mxu0 0
  %59 = vmatprep.subr.bf16.mxu0 0
  %60 = vmatpush1.bf16.msra.mxu0 0
  %61 = vmatprep.subr.bf16.mxu0 0
  %62 = vmatpush1.bf16.msra.mxu0 0
  %63 = vmatprep.subr.bf16.mxu0 0
  %64 = vmatpush1.bf16.msra.mxu0 0
  %65 = vmatprep.subr.bf16.mxu0 0
  %66 = vmatpush1.bf16.msra.mxu0 0
  %67 = vmatprep.subr.bf16.mxu0 0
  %68 = vmatpush1.bf16.msra.mxu0 0
  %69 = vmatprep.subr.bf16.mxu0 0
  %70 = vmatpush1.bf16.msra.mxu0 0
  %71 = vmatprep.subr.bf16.mxu0 0
  %72 = vmatpush1.bf16.msra.mxu0 0
  %73 = vmatprep.subr.bf16.mxu0 0
  %74 = vmatpush1.bf16.msra.mxu0 0
  %75 = vmatprep.mubr.bf16.mxu0 0
  %76 = vmatmul.mubr.bf16.gmra.mrb[0].mxu0 %v41
  %v77 = vpop.f32.mrb[0].mxu0
  %v78 = vadd.f32 %v32, %v77
  %v79 = vpop.f32.mrb[0].mxu0
  %v80 = vpop.f32.mrb[0].mxu0
  %v81 = vpop.f32.mrb[0].mxu0
  %82 = vdwg.mxu0
  %v83 = vmax.f32 %v78, 0.0
  %v84 = vpack.c.bf16 %v83, %v83
  %v85 = vld [vmem:[%s2] sm:$0xf]
  %v86 = vld [vmem:[%s2 + $0x4] sm:$0xf]
  %v87 = vld [vmem:[%s2 + $0x8] sm:$0xf]
  %v88 = vld [vmem:[%s2 + $0xc] sm:$0xf]
  %v89 = vlaneseq
  %v90 = vshrl.u32 %v89, 7
  %v91 = vsub.s32 1, %v90
  %v92 = vrot.slane %v25, %v91
  %v97 = vunpack.c.l.b16 %v85
  %v98 = vunpack.c.l.b16 %v86
  %v99 = vunpack.c.l.b16 %v87
  %v100 = vunpack.c.l.b16 %v88
  %v101 = vpack.c.b16 %v98, %v97
  %v102 = vpack.c.b16 %v100, %v99
  %vm105 = vcmask 261120
  %v107 = vsel %vm105, %v84, 0
  %109 = vmatprep.subr.bf16.mxu0 0
  %110 = vmatpush1.bf16.msra.mxu0 %v101
  %111 = vmatprep.subr.bf16.mxu0 0
  %112 = vmatpush1.bf16.msra.mxu0 %v102
  %113 = vmatprep.subr.bf16.mxu0 0
  %114 = vmatpush1.bf16.msra.mxu0 0
  %115 = vmatprep.subr.bf16.mxu0 0
  %116 = vmatpush1.bf16.msra.mxu0 0
  %117 = vmatprep.subr.bf16.mxu0 0
  %118 = vmatpush1.bf16.msra.mxu0 0
  %119 = vmatprep.subr.bf16.mxu0 0
  %120 = vmatpush1.bf16.msra.mxu0 0
  %121 = vmatprep.subr.bf16.mxu0 0
  %122 = vmatpush1.bf16.msra.mxu0 0
  %123 = vmatprep.subr.bf16.mxu0 0
  %124 = vmatpush1.bf16.msra.mxu0 0
  %125 = vmatprep.subr.bf16.mxu0 0
  %126 = vmatpush1.bf16.msra.mxu0 0
  %127 = vmatprep.subr.bf16.mxu0 0
  %128 = vmatpush1.bf16.msra.mxu0 0
  %129 = vmatprep.subr.bf16.mxu0 0
  %130 = vmatpush1.bf16.msra.mxu0 0
  %131 = vmatprep.subr.bf16.mxu0 0
  %132 = vmatpush1.bf16.msra.mxu0 0
  %133 = vmatprep.subr.bf16.mxu0 0
  %134 = vmatpush1.bf16.msra.mxu0 0
  %135 = vmatprep.subr.bf16.mxu0 0
  %136 = vmatpush1.bf16.msra.mxu0 0
  %137 = vmatprep.subr.bf16.mxu0 0
  %138 = vmatpush1.bf16.msra.mxu0 0
  %139 = vmatprep.subr.bf16.mxu0 0
  %140 = vmatpush1.bf16.msra.mxu0 0
  %141 = vmatprep.mubr.bf16.mxu0 0
  %142 = vmatmul.mubr.bf16.gmra.mrb[0].mxu0 %v107
  %v143 = vpop.f32.mrb[0].mxu0
  %v144 = vadd.f32 %v92, %v143
  %v145 = vpop.f32.mrb[0].mxu0
  %v146 = vpop.f32.mrb[0].mxu0
  %v147 = vpop.f32.mrb[0].mxu0
  %148 = vdwg.mxu0
  %v149 = vmax.f32 %v144, 0.0
  %v150 = vpack.c.bf16 %v149, %v149
  %s151 = scalar_lea.vmem %s2, 16
  %v152 = vld [vmem:[%s151] sm:$0xf]
  %v153 = vld [vmem:[%s151 + $0x4] sm:$0xf]
  %v154 = vld [vmem:[%s151 + $0x8] sm:$0xf]
  %v155 = vld [vmem:[%s151 + $0xc] sm:$0xf]
  %v156 = vlaneseq
  %v157 = vshrl.u32 %v156, 7
  %v158 = vsub.s32 2, %v157
  %v159 = vrot.slane %v25, %v158
  %v164 = vunpack.c.l.b16 %v152
  %v165 = vunpack.c.l.b16 %v153
  %v166 = vunpack.c.l.b16 %v154
  %v167 = vunpack.c.l.b16 %v155
  %v168 = vpack.c.b16 %v165, %v164
  %v169 = vpack.c.b16 %v167, %v166
  %v173 = vsel %vm105, %v150, 0
  %175 = vmatprep.subr.bf16.mxu0 0
  %176 = vmatpush1.bf16.msra.mxu0 %v168
  %177 = vmatprep.subr.bf16.mxu0 0
  %178 = vmatpush1.bf16.msra.mxu0 %v169
  %179 = vmatprep.subr.bf16.mxu0 0
  %180 = vmatpush1.bf16.msra.mxu0 0
  %181 = vmatprep.subr.bf16.mxu0 0
  %182 = vmatpush1.bf16.msra.mxu0 0
  %183 = vmatprep.subr.bf16.mxu0 0
  %184 = vmatpush1.bf16.msra.mxu0 0
  %185 = vmatprep.subr.bf16.mxu0 0
  %186 = vmatpush1.bf16.msra.mxu0 0
  %187 = vmatprep.subr.bf16.mxu0 0
  %188 = vmatpush1.bf16.msra.mxu0 0
  %189 = vmatprep.subr.bf16.mxu0 0
  %190 = vmatpush1.bf16.msra.mxu0 0
  %191 = vmatprep.subr.bf16.mxu0 0
  %192 = vmatpush1.bf16.msra.mxu0 0
  %193 = vmatprep.subr.bf16.mxu0 0
  %194 = vmatpush1.bf16.msra.mxu0 0
  %195 = vmatprep.subr.bf16.mxu0 0
  %196 = vmatpush1.bf16.msra.mxu0 0
  %197 = vmatprep.subr.bf16.mxu0 0
  %198 = vmatpush1.bf16.msra.mxu0 0
  %199 = vmatprep.subr.bf16.mxu0 0
  %200 = vmatpush1.bf16.msra.mxu0 0
  %201 = vmatprep.subr.bf16.mxu0 0
  %202 = vmatpush1.bf16.msra.mxu0 0
  %203 = vmatprep.subr.bf16.mxu0 0
  %204 = vmatpush1.bf16.msra.mxu0 0
  %205 = vmatprep.subr.bf16.mxu0 0
  %206 = vmatpush1.bf16.msra.mxu0 0
  %207 = vmatprep.mubr.bf16.mxu0 0
  %208 = vmatmul.mubr.bf16.gmra.mrb[0].mxu0 %v173
  %v209 = vpop.f32.mrb[0].mxu0
  %v210 = vadd.f32 %v159, %v209
  %v211 = vpop.f32.mrb[0].mxu0
  %v212 = vpop.f32.mrb[0].mxu0
  %v213 = vpop.f32.mrb[0].mxu0
  %214 = vdwg.mxu0
  %v215 = vmax.f32 %v210, 0.0
  %v216 = vpack.c.bf16 %v215, %v215
  %s217 = scalar_lea.vmem %s2, 32
  %v218 = vld [vmem:[%s217] sm:$0xf]
  %v219 = vld [vmem:[%s217 + $0x4] sm:$0xf]
  %v220 = vld [vmem:[%s217 + $0x8] sm:$0xf]
  %v221 = vld [vmem:[%s217 + $0xc] sm:$0xf]
  %v222 = vlaneseq
  %v223 = vshrl.u32 %v222, 7
  %v224 = vsub.s32 3, %v223
  %v225 = vrot.slane %v25, %v224
  %v230 = vunpack.c.l.b16 %v218
  %v231 = vunpack.c.l.b16 %v219
  %v232 = vunpack.c.l.b16 %v220
  %v233 = vunpack.c.l.b16 %v221
  %v234 = vpack.c.b16 %v231, %v230
  %v235 = vpack.c.b16 %v233, %v232
  %v239 = vsel %vm105, %v216, 0
  %241 = vmatprep.subr.bf16.mxu0 0
  %242 = vmatpush1.bf16.msra.mxu0 %v234
  %243 = vmatprep.subr.bf16.mxu0 0
  %244 = vmatpush1.bf16.msra.mxu0 %v235
  %245 = vmatprep.subr.bf16.mxu0 0
  %246 = vmatpush1.bf16.msra.mxu0 0
  %247 = vmatprep.subr.bf16.mxu0 0
  %248 = vmatpush1.bf16.msra.mxu0 0
  %249 = vmatprep.subr.bf16.mxu0 0
  %250 = vmatpush1.bf16.msra.mxu0 0
  %251 = vmatprep.subr.bf16.mxu0 0
  %252 = vmatpush1.bf16.msra.mxu0 0
  %253 = vmatprep.subr.bf16.mxu0 0
  %254 = vmatpush1.bf16.msra.mxu0 0
  %255 = vmatprep.subr.bf16.mxu0 0
  %256 = vmatpush1.bf16.msra.mxu0 0
  %257 = vmatprep.subr.bf16.mxu0 0
  %258 = vmatpush1.bf16.msra.mxu0 0
  %259 = vmatprep.subr.bf16.mxu0 0
  %260 = vmatpush1.bf16.msra.mxu0 0
  %261 = vmatprep.subr.bf16.mxu0 0
  %262 = vmatpush1.bf16.msra.mxu0 0
  %263 = vmatprep.subr.bf16.mxu0 0
  %264 = vmatpush1.bf16.msra.mxu0 0
  %265 = vmatprep.subr.bf16.mxu0 0
  %266 = vmatpush1.bf16.msra.mxu0 0
  %267 = vmatprep.subr.bf16.mxu0 0
  %268 = vmatpush1.bf16.msra.mxu0 0
  %269 = vmatprep.subr.bf16.mxu0 0
  %270 = vmatpush1.bf16.msra.mxu0 0
  %271 = vmatprep.subr.bf16.mxu0 0
  %272 = vmatpush1.bf16.msra.mxu0 0
  %273 = vmatprep.mubr.bf16.mxu0 0
  %274 = vmatmul.mubr.bf16.gmra.mrb[0].mxu0 %v239
  %v275 = vpop.f32.mrb[0].mxu0
  %v276 = vadd.f32 %v225, %v275
  %v277 = vpop.f32.mrb[0].mxu0
  %v278 = vpop.f32.mrb[0].mxu0
  %v279 = vpop.f32.mrb[0].mxu0
  %280 = vdwg.mxu0
  %v281 = vmax.f32 %v276, 0.0
  %v282 = vpack.c.bf16 %v281, %v281
  %v283 = vld [vmem:[%s4] sm:$0xf]
  %v284 = vld [vmem:[%s4 + $0x4] sm:$0xf]
  %v285 = vld [vmem:[%s4 + $0x8] sm:$0xf]
  %v286 = vld [vmem:[%s4 + $0xc] sm:$0xf]
  %v287 = vld [vmem:[%s5] sm:$0x1]
  %v289 = vlaneseq
  %v290 = vshrl.u32 %v289, 7
  %v291 = vsub.s32 0, %v290
  %v292 = vrot.slane %v287, %v291
  %v298 = vunpack.c.l.b16 %v283
  %v299 = vunpack.c.l.b16 %v284
  %v300 = vunpack.c.l.b16 %v285
  %v301 = vunpack.c.l.b16 %v286
  %v302 = vpack.c.b16 %v299, %v298
  %v303 = vpack.c.b16 %v301, %v300
  %v307 = vsel %vm105, %v282, 0
  %309 = vmatprep.subr.bf16.mxu0 0
  %310 = vmatpush1.bf16.msra.mxu0 %v302
  %311 = vmatprep.subr.bf16.mxu0 0
  %312 = vmatpush1.bf16.msra.mxu0 %v303
  %313 = vmatprep.subr.bf16.mxu0 0
  %314 = vmatpush1.bf16.msra.mxu0 0
  %315 = vmatprep.subr.bf16.mxu0 0
  %316 = vmatpush1.bf16.msra.mxu0 0
  %317 = vmatprep.subr.bf16.mxu0 0
  %318 = vmatpush1.bf16.msra.mxu0 0
  %319 = vmatprep.subr.bf16.mxu0 0
  %320 = vmatpush1.bf16.msra.mxu0 0
  %321 = vmatprep.subr.bf16.mxu0 0
  %322 = vmatpush1.bf16.msra.mxu0 0
  %323 = vmatprep.subr.bf16.mxu0 0
  %324 = vmatpush1.bf16.msra.mxu0 0
  %325 = vmatprep.subr.bf16.mxu0 0
  %326 = vmatpush1.bf16.msra.mxu0 0
  %327 = vmatprep.subr.bf16.mxu0 0
  %328 = vmatpush1.bf16.msra.mxu0 0
  %329 = vmatprep.subr.bf16.mxu0 0
  %330 = vmatpush1.bf16.msra.mxu0 0
  %331 = vmatprep.subr.bf16.mxu0 0
  %332 = vmatpush1.bf16.msra.mxu0 0
  %333 = vmatprep.subr.bf16.mxu0 0
  %334 = vmatpush1.bf16.msra.mxu0 0
  %335 = vmatprep.subr.bf16.mxu0 0
  %336 = vmatpush1.bf16.msra.mxu0 0
  %337 = vmatprep.subr.bf16.mxu0 0
  %338 = vmatpush1.bf16.msra.mxu0 0
  %339 = vmatprep.subr.bf16.mxu0 0
  %340 = vmatpush1.bf16.msra.mxu0 0
  %341 = vmatprep.mubr.bf16.mxu0 0
  %342 = vmatmul.mubr.bf16.gmra.mrb[0].mxu0 %v307
  %v343 = vpop.f32.mrb[0].mxu0
  %v344 = vadd.f32 %v292, %v343
  %v345 = vpop.f32.mrb[0].mxu0
  %v346 = vpop.f32.mrb[0].mxu0
  %v347 = vpop.f32.mrb[0].mxu0
  %348 = vdwg.mxu0
  %349 = vst [vmem:[%s6] sm:$0xff] %v344
  %v350 = vadd.f32 %v24, %v344
  %351 = vst.msk [vmem:[%s6] sm:$0xff] %vm39, %v350
  // Predicated region
  $region26: #{generic_block.1} parent=0 // pred_check
    _
  $region27: #{generic_block.1} parent=0 // pred_check_branch
    %353 = sbr.rel (0) target = $region29
  $region28: #{generic_block.1} parent=0 // pred_region
    _
  $region29: #{generic_block.1} parent=0 // pred_fallthru
    _
  // Predicated region
  $region30: #{generic_block.1} parent=0 // pred_check
    _
  $region31: #{generic_block.1} parent=0 // pred_check_branch
    %355 = sbr.rel (0) target = $region33
  $region32: #{generic_block.1} parent=0 // pred_region
    _
  $region33: #{generic_block.1} parent=0 // pred_fallthru
    _

</llo_original>
